<compile_context>
chip_gen: v6e
topology: v6e:2x2x1
jax: 0.10.0
libtpu: 0.0.40
codegen_flags: <defaults>
</compile_context>

<pallas_src>
import jax
import jax.numpy as jnp
from jax import lax
from jax.experimental import pallas as pl
from jax.experimental.pallas import tpu as pltpu

LAYER_DIMS = [128, 16, 16, 8, 8, 8, 1]   # output sizes of fc1..fc7
_CHUNK = 256                              # lane-chunk width (multiple of 128)
_W_SLAB = 16                              # sublane slab per packed small weight


def _round_up(n, m):
    return ((n + m - 1) // m) * m


def _bias_offsets():
    offs, off = [], 0
    for d in LAYER_DIMS:
        offs.append(off)
        off += _round_up(d, 8)            # keep every bias slice 8-row aligned
    return offs, off


_B_OFFS, _B_ROWS = _bias_offsets()        # [0,128,144,160,168,176,184], 192 rows


def _mlp_kernel(x_ref, w1_ref, wp_ref, bp_ref, o_ref):
    """One (TB, nfeat) batch tile -> (1, TB) sigmoid outputs, batch on lanes."""
    n_chunks = x_ref.shape[0] // _CHUNK

    def small_layer(h, k, act):
        # fc{k+1}: LAYER_DIMS[k-1] -> LAYER_DIMS[k]; slabs sliced at static,
        # tile-aligned offsets out of the packed weight / bias buffers.
        out_d, in_d = LAYER_DIMS[k], LAYER_DIMS[k - 1]
        w = wp_ref[(k - 1) * _W_SLAB:(k - 1) * _W_SLAB + out_d, :in_d]   # bf16
        b = bp_ref[_B_OFFS[k]:_B_OFFS[k] + out_d, :]                     # (out,1) f32
        z = jnp.dot(w, h, preferred_element_type=jnp.float32) + b
        return jnp.maximum(z, 0.0).astype(jnp.bfloat16) if act else z

    # Statically unrolled lane-chunk loop: static slices only (no dynamic
    # minor-dim indexing), short live ranges per chunk, full LLO visibility.
    for c in range(n_chunks):
        lo = c * _CHUNK
        xc = x_ref[lo:lo + _CHUNK, :].astype(jnp.bfloat16)       # (CHUNK, nfeat)
        # fc1: contract the feature axis -> (128, CHUNK), batch on lanes.
        z1 = lax.dot_general(w1_ref[...], xc, (((1,), (1,)), ((), ())),
                             preferred_element_type=jnp.float32)
        b1 = bp_ref[_B_OFFS[0]:_B_OFFS[0] + LAYER_DIMS[0], :]
        h = jnp.maximum(z1 + b1, 0.0).astype(jnp.bfloat16)       # (128, CHUNK)
        for k in range(1, 6):                                    # fc2..fc6 + ReLU
            h = small_layer(h, k, act=True)
        logits = small_layer(h, 6, act=False)                    # fc7 -> (1, CHUNK) f32
        # Sigmoid: exp + approx reciprocal both run on the EUP slot.
        o_ref[:, lo:lo + _CHUNK] = pl.reciprocal(
            1.0 + jnp.exp(-logits), approx=True).astype(o_ref.dtype)


def _pack_params(params):
    """params: list of 7 (w (out,in) f32, b (out,) f32) in PyTorch layout."""
    w1, _ = params[0]
    w1p = jnp.asarray(w1, jnp.bfloat16)                          # (128, nfeat)
    wp = jnp.zeros((_W_SLAB * 6, 128), jnp.bfloat16)             # fc2..fc7 weights
    for k, (w, _) in enumerate(params[1:]):
        o, i = w.shape
        wp = wp.at[_W_SLAB * k:_W_SLAB * k + o, :i].set(jnp.asarray(w, jnp.bfloat16))
    bp = jnp.zeros((_B_ROWS, 1), jnp.float32)                    # all 7 biases
    for off, (_, b) in zip(_B_OFFS, params):
        bp = bp.at[off:off + b.shape[0], 0].set(jnp.asarray(b, jnp.float32))
    return w1p, wp, bp


def _choose_tile(batch, tile_b):
    """Batch tile: multiple of _CHUNK, large enough to amortize per-step
    overhead, but split into >=2 grid steps when the batch allows it (v7x has
    2 TensorCores and the grid axis is 'parallel')."""
    cap = max(_CHUNK, _round_up(tile_b, _CHUNK))
    if batch <= cap:
        half = _round_up(max(pl.cdiv(batch, 2), 1), _CHUNK)
        return max(_CHUNK, min(cap, half))
    return cap


def net_forward(x, params, *, tile_b=2048):
    """x: (B, nfeatures) float32 -> (B, 1) float32 sigmoid outputs."""
    B, nfeat = x.shape
    TB = _choose_tile(B, tile_b)
    grid = (pl.cdiv(B, TB),)

    w1p, wp, bp = _pack_params(params)

    dims = [nfeat] + LAYER_DIMS
    flops = 2 * B * sum(dims[k] * dims[k + 1] for k in range(len(LAYER_DIMS)))
    bytes_accessed = (x.size * x.dtype.itemsize + w1p.size * 2
                      + wp.size * 2 + bp.size * 4 + B * 4)
    cost = pl.CostEstimate(flops=flops, transcendentals=2 * B,
                           bytes_accessed=bytes_accessed)

    # TODO(synk): on v7x only, the x stream / fc1 weight could be fed to the
    # MXU as fp8 e4m3 to halve the dominant HBM read; kept bf16 for portability.
    out = pl.pallas_call(
        _mlp_kernel,
        out_shape=jax.ShapeDtypeStruct((1, B), jnp.float32),
        grid=grid,
        in_specs=[
            pl.BlockSpec((TB, nfeat), lambda i: (i, 0)),   # x: one batch tile
            pl.BlockSpec(w1p.shape, lambda i: (0, 0)),     # fc1 weight, resident
            pl.BlockSpec(wp.shape, lambda i: (0, 0)),      # packed fc2..fc7 weights
            pl.BlockSpec(bp.shape, lambda i: (0, 0)),      # packed biases
        ],
        out_specs=pl.BlockSpec((1, TB), lambda i: (0, i)),
        compiler_params=pltpu.CompilerParams(
            dimension_semantics=("parallel",)),            # shard tiles across v7x TCs
        cost_estimate=cost,
    )(x, w1p, wp, bp)

    return out.T                                           # (B, 1)


def init_params(key, nfeatures):
    """Xavier-uniform weights (torch.nn.init.xavier_uniform_), biases = 0.01.

    Weights use PyTorch's nn.Linear layout: (out_features, in_features).
    """
    dims = [nfeatures] + LAYER_DIMS
    params = []
    for i in range(len(LAYER_DIMS)):
        fan_in, fan_out = dims[i], dims[i + 1]
        key, sub = jax.random.split(key)
        bound = (6.0 / (fan_in + fan_out)) ** 0.5
        w = jax.random.uniform(sub, (fan_out, fan_in), jnp.float32, -bound, bound)
        b = jnp.full((fan_out,), 0.01, jnp.float32)
        params.append((w, b))
    return params


def net_forward_ref(x, params):
    """Pure-JAX reference emulating the kernel's bf16-matmul / f32-accumulate mix."""
    h = x.astype(jnp.bfloat16)
    z = None
    for i, (w, b) in enumerate(params):
        z = jnp.dot(h, w.astype(jnp.bfloat16).T,
                    preferred_element_type=jnp.float32) + b
        if i < len(params) - 1:
            h = jnp.maximum(z, 0.0).astype(jnp.bfloat16)
    return jax.nn.sigmoid(z)


if __name__ == "__main__":
    key = jax.random.PRNGKey(0)
    nfeatures = 32
    params = init_params(key, nfeatures)

    # batch=8: single tile, single chunk.  batch=600: 2 grid steps, 2 chunks
    # per tile, partial tail tile (exercises the no-pad path).
    for batch in (8, 600):
        key, xkey = jax.random.split(key)
        x = jax.random.normal(xkey, (batch, nfeatures), jnp.float32)

        out = jax.block_until_ready(net_forward(x, params))
        ref = net_forward_ref(x, params)

        assert out.shape == (batch, 1), out.shape
        assert bool(jnp.all(jnp.isfinite(out)))
        err = float(jnp.max(jnp.abs(out - ref)))
        assert err < 5e-3, f"batch={batch}: max abs err {err}"

    print("KERNEL_OK")
</pallas_src>

<mosaic_0001>
module attributes {stable_mosaic.version = 11 : i64} {
  func.func @_mlp_kernel(%arg0: i32, %arg1: memref<256x32xf32, #tpu.memory_space<vmem>>, %arg2: memref<128x32xbf16, #tpu.memory_space<vmem>>, %arg3: memref<96x128xbf16, #tpu.memory_space<vmem>>, %arg4: memref<192x1xf32, #tpu.memory_space<vmem>>, %arg5: memref<1x256xf32, #tpu.memory_space<vmem>>) attributes {dimension_semantics = [#tpu.dimension_semantics<parallel>], iteration_bounds = array<i64: 1>, scalar_prefetch = 0 : i64, scratch_operands = 0 : i64, tpu.core_type = #tpu.core_type<tc>, window_params = [{transform_indices = @transform_0, window_bounds = array<i64: 256, 32>}, {pipeline_mode = #tpu.pipeline_mode<synchronous>, transform_indices = @transform_1, window_bounds = array<i64: 128, 32>}, {pipeline_mode = #tpu.pipeline_mode<synchronous>, transform_indices = @transform_2, window_bounds = array<i64: 96, 128>}, {pipeline_mode = #tpu.pipeline_mode<synchronous>, transform_indices = @transform_3, window_bounds = array<i64: 192, 1>}, {transform_indices = @transform_4, window_bounds = array<i64: 1, 256>}]} {
    %c0 = arith.constant 0 : index
    %c0_0 = arith.constant 0 : index
    %0 = vector.load %arg1[%c0, %c0_0] : memref<256x32xf32, #tpu.memory_space<vmem>>, vector<256x32xf32>
    %1 = arith.truncf %0 : vector<256x32xf32> to vector<256x32xbf16>
    %c0_1 = arith.constant 0 : index
    %c0_2 = arith.constant 0 : index
    %2 = vector.load %arg2[%c0_1, %c0_2] : memref<128x32xbf16, #tpu.memory_space<vmem>>, vector<128x32xbf16>
    %cst = arith.constant dense<0.000000e+00> : vector<128x256xf32>
    %3 = tpu.matmul %2, %1, %cst {dimension_numbers = #tpu.dot_dimension_numbers<[1], [1], [0], [0], [0, 0, 1, 0], [], []>} : vector<128x32xbf16>, vector<256x32xbf16>, vector<128x256xf32> -> vector<128x256xf32>
    %c0_3 = arith.constant 0 : index
    %c0_4 = arith.constant 0 : index
    %4 = vector.load %arg4[%c0_3, %c0_4] : memref<192x1xf32, #tpu.memory_space<vmem>>, vector<128x1xf32>
    %5 = vector.broadcast %4 : vector<128x1xf32> to vector<128x256xf32>
    %6 = arith.addf %3, %5 : vector<128x256xf32>
    %cst_5 = arith.constant 0.000000e+00 : f32
    %7 = vector.broadcast %cst_5 : f32 to vector<128x256xf32>
    %8 = arith.maximumf %6, %7 : vector<128x256xf32>
    %9 = arith.truncf %8 : vector<128x256xf32> to vector<128x256xbf16>
    %c0_6 = arith.constant 0 : index
    %c0_7 = arith.constant 0 : index
    %10 = vector.load %arg3[%c0_6, %c0_7] : memref<96x128xbf16, #tpu.memory_space<vmem>>, vector<16x128xbf16>
    %c128 = arith.constant 128 : index
    %c0_8 = arith.constant 0 : index
    %11 = vector.load %arg4[%c128, %c0_8] : memref<192x1xf32, #tpu.memory_space<vmem>>, vector<16x1xf32>
    %cst_9 = arith.constant dense<0.000000e+00> : vector<16x256xf32>
    %12 = tpu.matmul %10, %9, %cst_9 {dimension_numbers = #tpu.dot_dimension_numbers<[1], [0], [0], [1], [0, 0, 1, 1], [], []>} : vector<16x128xbf16>, vector<128x256xbf16>, vector<16x256xf32> -> vector<16x256xf32>
    %13 = vector.broadcast %11 : vector<16x1xf32> to vector<16x256xf32>
    %14 = arith.addf %12, %13 : vector<16x256xf32>
    %cst_10 = arith.constant 0.000000e+00 : f32
    %15 = vector.broadcast %cst_10 : f32 to vector<16x256xf32>
    %16 = arith.maximumf %14, %15 : vector<16x256xf32>
    %17 = arith.truncf %16 : vector<16x256xf32> to vector<16x256xbf16>
    %c16 = arith.constant 16 : index
    %c0_11 = arith.constant 0 : index
    %18 = vector.load %arg3[%c16, %c0_11] : memref<96x128xbf16, #tpu.memory_space<vmem>>, vector<16x16xbf16>
    %c144 = arith.constant 144 : index
    %c0_12 = arith.constant 0 : index
    %19 = vector.load %arg4[%c144, %c0_12] : memref<192x1xf32, #tpu.memory_space<vmem>>, vector<16x1xf32>
    %cst_13 = arith.constant dense<0.000000e+00> : vector<16x256xf32>
    %20 = tpu.matmul %18, %17, %cst_13 {dimension_numbers = #tpu.dot_dimension_numbers<[1], [0], [0], [1], [0, 0, 1, 1], [], []>} : vector<16x16xbf16>, vector<16x256xbf16>, vector<16x256xf32> -> vector<16x256xf32>
    %21 = vector.broadcast %19 : vector<16x1xf32> to vector<16x256xf32>
    %22 = arith.addf %20, %21 : vector<16x256xf32>
    %cst_14 = arith.constant 0.000000e+00 : f32
    %23 = vector.broadcast %cst_14 : f32 to vector<16x256xf32>
    %24 = arith.maximumf %22, %23 : vector<16x256xf32>
    %25 = arith.truncf %24 : vector<16x256xf32> to vector<16x256xbf16>
    %c32 = arith.constant 32 : index
    %c0_15 = arith.constant 0 : index
    %26 = vector.load %arg3[%c32, %c0_15] : memref<96x128xbf16, #tpu.memory_space<vmem>>, vector<8x16xbf16>
    %c160 = arith.constant 160 : index
    %c0_16 = arith.constant 0 : index
    %27 = vector.load %arg4[%c160, %c0_16] : memref<192x1xf32, #tpu.memory_space<vmem>>, vector<8x1xf32>
    %cst_17 = arith.constant dense<0.000000e+00> : vector<8x256xf32>
    %28 = tpu.matmul %26, %25, %cst_17 {dimension_numbers = #tpu.dot_dimension_numbers<[1], [0], [0], [1], [0, 0, 1, 1], [], []>} : vector<8x16xbf16>, vector<16x256xbf16>, vector<8x256xf32> -> vector<8x256xf32>
    %29 = vector.broadcast %27 : vector<8x1xf32> to vector<8x256xf32>
    %30 = arith.addf %28, %29 : vector<8x256xf32>
    %cst_18 = arith.constant 0.000000e+00 : f32
    %31 = vector.broadcast %cst_18 : f32 to vector<8x256xf32>
    %32 = arith.maximumf %30, %31 : vector<8x256xf32>
    %33 = arith.truncf %32 : vector<8x256xf32> to vector<8x256xbf16>
    %c48 = arith.constant 48 : index
    %c0_19 = arith.constant 0 : index
    %34 = vector.load %arg3[%c48, %c0_19] : memref<96x128xbf16, #tpu.memory_space<vmem>>, vector<8x8xbf16>
    %c168 = arith.constant 168 : index
    %c0_20 = arith.constant 0 : index
    %35 = vector.load %arg4[%c168, %c0_20] : memref<192x1xf32, #tpu.memory_space<vmem>>, vector<8x1xf32>
    %cst_21 = arith.constant dense<0.000000e+00> : vector<8x256xf32>
    %36 = tpu.matmul %34, %33, %cst_21 {dimension_numbers = #tpu.dot_dimension_numbers<[1], [0], [0], [1], [0, 0, 1, 1], [], []>} : vector<8x8xbf16>, vector<8x256xbf16>, vector<8x256xf32> -> vector<8x256xf32>
    %37 = vector.broadcast %35 : vector<8x1xf32> to vector<8x256xf32>
    %38 = arith.addf %36, %37 : vector<8x256xf32>
    %cst_22 = arith.constant 0.000000e+00 : f32
    %39 = vector.broadcast %cst_22 : f32 to vector<8x256xf32>
    %40 = arith.maximumf %38, %39 : vector<8x256xf32>
    %41 = arith.truncf %40 : vector<8x256xf32> to vector<8x256xbf16>
    %c64 = arith.constant 64 : index
    %c0_23 = arith.constant 0 : index
    %42 = vector.load %arg3[%c64, %c0_23] : memref<96x128xbf16, #tpu.memory_space<vmem>>, vector<8x8xbf16>
    %c176 = arith.constant 176 : index
    %c0_24 = arith.constant 0 : index
    %43 = vector.load %arg4[%c176, %c0_24] : memref<192x1xf32, #tpu.memory_space<vmem>>, vector<8x1xf32>
    %cst_25 = arith.constant dense<0.000000e+00> : vector<8x256xf32>
    %44 = tpu.matmul %42, %41, %cst_25 {dimension_numbers = #tpu.dot_dimension_numbers<[1], [0], [0], [1], [0, 0, 1, 1], [], []>} : vector<8x8xbf16>, vector<8x256xbf16>, vector<8x256xf32> -> vector<8x256xf32>
    %45 = vector.broadcast %43 : vector<8x1xf32> to vector<8x256xf32>
    %46 = arith.addf %44, %45 : vector<8x256xf32>
    %cst_26 = arith.constant 0.000000e+00 : f32
    %47 = vector.broadcast %cst_26 : f32 to vector<8x256xf32>
    %48 = arith.maximumf %46, %47 : vector<8x256xf32>
    %49 = arith.truncf %48 : vector<8x256xf32> to vector<8x256xbf16>
    %c80 = arith.constant 80 : index
    %c0_27 = arith.constant 0 : index
    %50 = vector.load %arg3[%c80, %c0_27] : memref<96x128xbf16, #tpu.memory_space<vmem>>, vector<1x8xbf16>
    %c184 = arith.constant 184 : index
    %c0_28 = arith.constant 0 : index
    %51 = vector.load %arg4[%c184, %c0_28] : memref<192x1xf32, #tpu.memory_space<vmem>>, vector<1x1xf32>
    %cst_29 = arith.constant dense<0.000000e+00> : vector<1x256xf32>
    %52 = tpu.matmul %50, %49, %cst_29 {dimension_numbers = #tpu.dot_dimension_numbers<[1], [0], [0], [1], [0, 0, 1, 1], [], []>} : vector<1x8xbf16>, vector<8x256xbf16>, vector<1x256xf32> -> vector<1x256xf32>
    %53 = vector.broadcast %51 : vector<1x1xf32> to vector<1x256xf32>
    %54 = arith.addf %52, %53 : vector<1x256xf32>
    %cst_30 = arith.constant 0.000000e+00 : f32
    %55 = vector.broadcast %cst_30 : f32 to vector<1x256xf32>
    %56 = arith.subf %55, %54 : vector<1x256xf32>
    %57 = math.exp %56 : vector<1x256xf32>
    %cst_31 = arith.constant 1.000000e+00 : f32
    %58 = vector.broadcast %cst_31 : f32 to vector<1x256xf32>
    %59 = arith.addf %58, %57 : vector<1x256xf32>
    %60 = tpu.reciprocal %59 {approx = true} : vector<1x256xf32> -> vector<1x256xf32>
    %c0_32 = arith.constant 0 : index
    %c0_33 = arith.constant 0 : index
    %61 = vector.load %arg5[%c0_32, %c0_33] : memref<1x256xf32, #tpu.memory_space<vmem>>, vector<1x256xf32>
    tpu.vector_store %arg5[%c0_32, %c0_33], %60 {strides = array<i32>} : memref<1x256xf32, #tpu.memory_space<vmem>>, vector<1x256xf32>,
    return
  }
  func.func @transform_0(%arg0: i32) -> (i32, i32) {
    %c0_i32 = arith.constant 0 : i32
    %c0_i32_0 = arith.constant 0 : i32
    return %arg0, %c0_i32 : i32, i32
  }
  func.func @transform_1(%arg0: i32) -> (i32, i32) {
    %c0_i32 = arith.constant 0 : i32
    %c0_i32_0 = arith.constant 0 : i32
    %c0_i32_1 = arith.constant 0 : i32
    return %c0_i32, %c0_i32_0 : i32, i32
  }
  func.func @transform_2(%arg0: i32) -> (i32, i32) {
    %c0_i32 = arith.constant 0 : i32
    %c0_i32_0 = arith.constant 0 : i32
    %c0_i32_1 = arith.constant 0 : i32
    return %c0_i32, %c0_i32_0 : i32, i32
  }
  func.func @transform_3(%arg0: i32) -> (i32, i32) {
    %c0_i32 = arith.constant 0 : i32
    %c0_i32_0 = arith.constant 0 : i32
    %c0_i32_1 = arith.constant 0 : i32
    return %c0_i32, %c0_i32_0 : i32, i32
  }
  func.func @transform_4(%arg0: i32) -> (i32, i32) {
    %c0_i32 = arith.constant 0 : i32
    %c0_i32_0 = arith.constant 0 : i32
    return %c0_i32, %arg0 : i32, i32
  }
}

</mosaic_0001>

<llo_original>
// kernel: tpu_custom_call.1
$region0: #{tpu_custom_call.1}
  #allocation0 [shape = 'u32[]', space=smem, size = 0x4, offset = 0x4, fixed_abs, tag = 'smem constant byte address 0x4 - core index']
  #allocation1 [shape = 'u32[144,128]{1,0:T(1,128)}', space=vmem, size = 0x12000, scoped, tag = 'internal scratch']
  %s0 = inlined_call_operand.vmem [shape: f32[8,32], index: 0, kind: input, shape index: {}]
  %s1 = inlined_call_operand.vmem [shape: bf16[128,32], index: 1, kind: input, shape index: {}]
  %s2 = inlined_call_operand.vmem [shape: bf16[96,128], index: 2, kind: input, shape index: {}]
  %s3 = inlined_call_operand.vmem [shape: f32[192,1], index: 3, kind: input, shape index: {}]
  %s4 = inlined_call_operand.hbm [shape: f32[1,8], index: 4, kind: output, shape index: {}]
  %s5 = sld [smem:[#allocation0]]
  $region26: #{tpu_custom_call.1} parent=0
    _
  %s7 = ssub.s32 1, %s5
  %s8 = scalar_select 0, %s7, %s5
  $region1: #{tpu_custom_call.1} parent=0
    #allocation2 [shape = 'u8[1024]{0}', space=vmem, size = 0x400, scoped, tag = 'output window, operand 0, single buffered']
    #allocation3 [shape = 's32[1]{0}', space=sflag, size = 0x4, scoped, tag = 'scoped memory for tpu_custom_call.1']
    %9 = vsyncpa [#allocation3], 0
    // Predicated region
    $region2: #{tpu_custom_call.1} parent=1 // pred_check
      _
    $region3: #{tpu_custom_call.1} parent=1 // pred_check_branch
      %11 = sbr.rel (0) target = $region5
    $region4: #{tpu_custom_call.1} parent=1 // pred_region
      _
    $region5: #{tpu_custom_call.1} parent=1 // pred_fallthru
      _
    // Predicated region
    $region6: #{tpu_custom_call.1} parent=1 // pred_check
      _
    $region7: #{tpu_custom_call.1} parent=1 // pred_check_branch
      %13 = sbr.rel (0) target = $region9
    $region8: #{tpu_custom_call.1} parent=1 // pred_region
      _
    $region9: #{tpu_custom_call.1} parent=1 // pred_fallthru
      _
    // Predicated region
    $region10: #{tpu_custom_call.1} parent=1 // pred_check
      _
    $region11: #{tpu_custom_call.1} parent=1 // pred_check_branch
      %15 = sbr.rel (0) target = $region13
    $region12: #{tpu_custom_call.1} parent=1 // pred_region
      _
    $region13: #{tpu_custom_call.1} parent=1 // pred_fallthru
      _
    // Predicated region
    $region14: #{tpu_custom_call.1} parent=1 // pred_check
      _
    $region15: #{tpu_custom_call.1} parent=1 // pred_check_branch
      %17 = sbr.rel (0) target = $region17
    $region16: #{tpu_custom_call.1} parent=1 // pred_region
      _
    $region17: #{tpu_custom_call.1} parent=1 // pred_fallthru
      _
    %v19 = vld [vmem:[%s0] sm:$0xff]
    %v20 = vld [vmem:[%s0 + $0x8] sm:$0xff]
    %v21 = vld [vmem:[%s0 + $0x10] sm:$0xff]
    %v22 = vld [vmem:[%s0 + $0x18] sm:$0xff]
    %v23 = vld [vmem:[%s0 + $0x20] sm:$0xff]
    %v24 = vld [vmem:[%s0 + $0x28] sm:$0xff]
    %v25 = vld [vmem:[%s0 + $0x30] sm:$0xff]
    %v26 = vld [vmem:[%s0 + $0x38] sm:$0xff]
    %v27 = vld [vmem:[%s0 + $0x40] sm:$0xff]
    %v28 = vld [vmem:[%s0 + $0x48] sm:$0xff]
    %v29 = vld [vmem:[%s0 + $0x50] sm:$0xff]
    %v30 = vld [vmem:[%s0 + $0x58] sm:$0xff]
    %v31 = vld [vmem:[%s0 + $0x60] sm:$0xff]
    %v32 = vld [vmem:[%s0 + $0x68] sm:$0xff]
    %v33 = vld [vmem:[%s0 + $0x70] sm:$0xff]
    %v34 = vld [vmem:[%s0 + $0x78] sm:$0xff]
    %v35 = vld [vmem:[%s0 + $0x80] sm:$0xff]
    %v36 = vld [vmem:[%s0 + $0x88] sm:$0xff]
    %v37 = vld [vmem:[%s0 + $0x90] sm:$0xff]
    %v38 = vld [vmem:[%s0 + $0x98] sm:$0xff]
    %v39 = vld [vmem:[%s0 + $0xa0] sm:$0xff]
    %v40 = vld [vmem:[%s0 + $0xa8] sm:$0xff]
    %v41 = vld [vmem:[%s0 + $0xb0] sm:$0xff]
    %v42 = vld [vmem:[%s0 + $0xb8] sm:$0xff]
    %v43 = vld [vmem:[%s0 + $0xc0] sm:$0xff]
    %v44 = vld [vmem:[%s0 + $0xc8] sm:$0xff]
    %v45 = vld [vmem:[%s0 + $0xd0] sm:$0xff]
    %v46 = vld [vmem:[%s0 + $0xd8] sm:$0xff]
    %v47 = vld [vmem:[%s0 + $0xe0] sm:$0xff]
    %v48 = vld [vmem:[%s0 + $0xe8] sm:$0xff]
    %v49 = vld [vmem:[%s0 + $0xf0] sm:$0xff]
    %v50 = vld [vmem:[%s0 + $0xf8] sm:$0xff]
    %v51 = vpack.c.bf16 %v20, %v19
    %v52 = vpack.c.bf16 %v22, %v21
    %v53 = vpack.c.bf16 %v24, %v23
    %v54 = vpack.c.bf16 %v26, %v25
    %v55 = vpack.c.bf16 %v28, %v27
    %v56 = vpack.c.bf16 %v30, %v29
    %v57 = vpack.c.bf16 %v32, %v31
    %v58 = vpack.c.bf16 %v34, %v33
    %v59 = vpack.c.bf16 %v36, %v35
    %v60 = vpack.c.bf16 %v38, %v37
    %v61 = vpack.c.bf16 %v40, %v39
    %v62 = vpack.c.bf16 %v42, %v41
    %v63 = vpack.c.bf16 %v44, %v43
    %v64 = vpack.c.bf16 %v46, %v45
    %v65 = vpack.c.bf16 %v48, %v47
    %v66 = vpack.c.bf16 %v50, %v49
    %v67 = vld [vmem:[%s1] sm:$0xf]
    %v68 = vld [vmem:[%s1 + $0x4] sm:$0xf]
    %v69 = vld [vmem:[%s1 + $0x8] sm:$0xf]
    %v70 = vld [vmem:[%s1 + $0xc] sm:$0xf]
    %v71 = vld [vmem:[%s1 + $0x10] sm:$0xf]
    %v72 = vld [vmem:[%s1 + $0x14] sm:$0xf]
    %v73 = vld [vmem:[%s1 + $0x18] sm:$0xf]
    %v74 = vld [vmem:[%s1 + $0x1c] sm:$0xf]
    %v75 = vld [vmem:[%s1 + $0x20] sm:$0xf]
    %v76 = vld [vmem:[%s1 + $0x24] sm:$0xf]
    %v77 = vld [vmem:[%s1 + $0x28] sm:$0xf]
    %v78 = vld [vmem:[%s1 + $0x2c] sm:$0xf]
    %v79 = vld [vmem:[%s1 + $0x30] sm:$0xf]
    %v80 = vld [vmem:[%s1 + $0x34] sm:$0xf]
    %v81 = vld [vmem:[%s1 + $0x38] sm:$0xf]
    %v82 = vld [vmem:[%s1 + $0x3c] sm:$0xf]
    %v83 = vld [vmem:[%s3] sm:$0xff]
    %v84 = vld [vmem:[%s3 + $0x8] sm:$0xff]
    %v85 = vld [vmem:[%s3 + $0x10] sm:$0xff]
    %v86 = vld [vmem:[%s3 + $0x18] sm:$0xff]
    %v87 = vld [vmem:[%s3 + $0x20] sm:$0xff]
    %v88 = vld [vmem:[%s3 + $0x28] sm:$0xff]
    %v89 = vld [vmem:[%s3 + $0x30] sm:$0xff]
    %v90 = vld [vmem:[%s3 + $0x38] sm:$0xff]
    %v91 = vld [vmem:[%s3 + $0x40] sm:$0xff]
    %v92 = vld [vmem:[%s3 + $0x48] sm:$0xff]
    %v93 = vld [vmem:[%s3 + $0x50] sm:$0xff]
    %v94 = vld [vmem:[%s3 + $0x58] sm:$0xff]
    %v95 = vld [vmem:[%s3 + $0x60] sm:$0xff]
    %v96 = vld [vmem:[%s3 + $0x68] sm:$0xff]
    %v97 = vld [vmem:[%s3 + $0x70] sm:$0xff]
    %v98 = vld [vmem:[%s3 + $0x78] sm:$0xff]
    %100 = vset.pattern.permute.xlu0 0
    %101 = vperm.xlu0 %100, %v83
    %v102 = vpop.permute.xlu0 %101
    %105 = vset.pattern.permute.xlu0 0
    %106 = vperm.xlu0 %105, %v84
    %v107 = vpop.permute.xlu0 %106
    %110 = vset.pattern.permute.xlu0 0
    %111 = vperm.xlu0 %110, %v85
    %v112 = vpop.permute.xlu0 %111
    %115 = vset.pattern.permute.xlu0 0
    %116 = vperm.xlu0 %115, %v86
    %v117 = vpop.permute.xlu0 %116
    %120 = vset.pattern.permute.xlu0 0
    %121 = vperm.xlu0 %120, %v87
    %v122 = vpop.permute.xlu0 %121
    %125 = vset.pattern.permute.xlu0 0
    %126 = vperm.xlu0 %125, %v88
    %v127 = vpop.permute.xlu0 %126
    %130 = vset.pattern.permute.xlu0 0
    %131 = vperm.xlu0 %130, %v89
    %v132 = vpop.permute.xlu0 %131
    %135 = vset.pattern.permute.xlu0 0
    %136 = vperm.xlu0 %135, %v90
    %v137 = vpop.permute.xlu0 %136
    %140 = vset.pattern.permute.xlu0 0
    %141 = vperm.xlu0 %140, %v91
    %v142 = vpop.permute.xlu0 %141
    %145 = vset.pattern.permute.xlu0 0
    %146 = vperm.xlu0 %145, %v92
    %v147 = vpop.permute.xlu0 %146
    %150 = vset.pattern.permute.xlu0 0
    %151 = vperm.xlu0 %150, %v93
    %v152 = vpop.permute.xlu0 %151
    %155 = vset.pattern.permute.xlu0 0
    %156 = vperm.xlu0 %155, %v94
    %v157 = vpop.permute.xlu0 %156
    %160 = vset.pattern.permute.xlu0 0
    %161 = vperm.xlu0 %160, %v95
    %v162 = vpop.permute.xlu0 %161
    %165 = vset.pattern.permute.xlu0 0
    %166 = vperm.xlu0 %165, %v96
    %v167 = vpop.permute.xlu0 %166
    %170 = vset.pattern.permute.xlu0 0
    %171 = vperm.xlu0 %170, %v97
    %v172 = vpop.permute.xlu0 %171
    %175 = vset.pattern.permute.xlu0 0
    %176 = vperm.xlu0 %175, %v98
    %v177 = vpop.permute.xlu0 %176
    %v195 = vunpack.c.l.b16 %v67
    %v196 = vunpack.c.l.b16 %v68
    %v197 = vunpack.c.l.b16 %v69
    %v198 = vunpack.c.l.b16 %v70
    %v199 = vunpack.c.l.b16 %v71
    %v200 = vunpack.c.l.b16 %v72
    %v201 = vunpack.c.l.b16 %v73
    %v202 = vunpack.c.l.b16 %v74
    %v203 = vunpack.c.l.b16 %v75
    %v204 = vunpack.c.l.b16 %v76
    %v205 = vunpack.c.l.b16 %v77
    %v206 = vunpack.c.l.b16 %v78
    %v207 = vunpack.c.l.b16 %v79
    %v208 = vunpack.c.l.b16 %v80
    %v209 = vunpack.c.l.b16 %v81
    %v210 = vunpack.c.l.b16 %v82
    %v211 = vpack.c.b16 %v196, %v195
    %v212 = vpack.c.b16 %v198, %v197
    %v213 = vpack.c.b16 %v200, %v199
    %v214 = vpack.c.b16 %v202, %v201
    %v215 = vpack.c.b16 %v204, %v203
    %v216 = vpack.c.b16 %v206, %v205
    %v217 = vpack.c.b16 %v208, %v207
    %v218 = vpack.c.b16 %v210, %v209
    %vm219 = vcmask 261120
    %v221 = vsel %vm219, %v211, 0
    %v224 = vsel %vm219, %v212, 0
    %v227 = vsel %vm219, %v213, 0
    %v230 = vsel %vm219, %v214, 0
    %v233 = vsel %vm219, %v215, 0
    %v236 = vsel %vm219, %v216, 0
    %v239 = vsel %vm219, %v217, 0
    %v242 = vsel %vm219, %v218, 0
    %v245 = vsel %vm219, %v51, 0
    %v248 = vsel %vm219, %v52, 0
    %v251 = vsel %vm219, %v53, 0
    %v254 = vsel %vm219, %v54, 0
    %v257 = vsel %vm219, %v55, 0
    %v260 = vsel %vm219, %v56, 0
    %v263 = vsel %vm219, %v57, 0
    %v266 = vsel %vm219, %v58, 0
    %v269 = vsel %vm219, %v59, 0
    %v272 = vsel %vm219, %v60, 0
    %v275 = vsel %vm219, %v61, 0
    %v278 = vsel %vm219, %v62, 0
    %v281 = vsel %vm219, %v63, 0
    %v284 = vsel %vm219, %v64, 0
    %v287 = vsel %vm219, %v65, 0
    %v290 = vsel %vm219, %v66, 0
    %292 = vmatprep.subr.bf16.mxu0 0
    %293 = vmatpush1.bf16.xpose.msra.mxu0 %v266
    %294 = vmatprep.subr.bf16.mxu0 0
    %295 = vmatpush1.bf16.xpose.msra.mxu0 %v263
    %296 = vmatprep.subr.bf16.mxu0 0
    %297 = vmatpush1.bf16.xpose.msra.mxu0 %v260
    %298 = vmatprep.subr.bf16.mxu0 0
    %299 = vmatpush1.bf16.xpose.msra.mxu0 %v257
    %300 = vmatprep.subr.bf16.mxu0 0
    %301 = vmatpush1.bf16.xpose.msra.mxu0 %v254
    %302 = vmatprep.subr.bf16.mxu0 0
    %303 = vmatpush1.bf16.xpose.msra.mxu0 %v251
    %304 = vmatprep.subr.bf16.mxu0 0
    %305 = vmatpush1.bf16.xpose.msra.mxu0 %v248
    %306 = vmatprep.subr.bf16.mxu0 0
    %307 = vmatpush1.bf16.xpose.msra.mxu0 %v245
    %308 = vmatprep.subr.bf16.mxu0 0
    %309 = vmatpush2.bf16.xpose.msra.mxu0 %v290
    %310 = vmatprep.subr.bf16.mxu0 0
    %311 = vmatpush2.bf16.xpose.msra.mxu0 %v287
    %312 = vmatprep.subr.bf16.mxu0 0
    %313 = vmatpush2.bf16.xpose.msra.mxu0 %v284
    %314 = vmatprep.subr.bf16.mxu0 0
    %315 = vmatpush2.bf16.xpose.msra.mxu0 %v281
    %316 = vmatprep.subr.bf16.mxu0 0
    %317 = vmatpush2.bf16.xpose.msra.mxu0 %v278
    %318 = vmatprep.subr.bf16.mxu0 0
    %319 = vmatpush2.bf16.xpose.msra.mxu0 %v275
    %320 = vmatprep.subr.bf16.mxu0 0
    %321 = vmatpush2.bf16.xpose.msra.mxu0 %v272
    %322 = vmatprep.subr.bf16.mxu0 0
    %323 = vmatpush2.bf16.xpose.msra.mxu0 %v269
    %324 = vmatprep.mubr.bf16.mxu0 0
    %325 = vmatmul.mubr.bf16.gmra.mxu0 %v221
    %v326 = vpop.f32.mrf.mxu0
    %v327 = vadd.f32 %v102, %v326
    %v328 = vpop.f32.mrf.mxu0
    %v329 = vadd.f32 %v102, %v328
    %v330 = vpop.f32.mrf.mxu0
    %v331 = vadd.f32 %v107, %v330
    %v332 = vpop.f32.mrf.mxu0
    %v333 = vadd.f32 %v107, %v332
    %334 = vmatprep.mubr.bf16.mxu0 0
    %335 = vmatmul.mubr.bf16.gmra.mxu0 %v224
    %v336 = vpop.f32.mrf.mxu0
    %v337 = vadd.f32 %v112, %v336
    %v338 = vpop.f32.mrf.mxu0
    %v339 = vadd.f32 %v112, %v338
    %v340 = vpop.f32.mrf.mxu0
    %v341 = vadd.f32 %v117, %v340
    %v342 = vpop.f32.mrf.mxu0
    %v343 = vadd.f32 %v117, %v342
    %344 = vmatprep.mubr.bf16.mxu0 0
    %345 = vmatmul.mubr.bf16.gmra.mxu0 %v227
    %v346 = vpop.f32.mrf.mxu0
    %v347 = vadd.f32 %v122, %v346
    %v348 = vpop.f32.mrf.mxu0
    %v349 = vadd.f32 %v122, %v348
    %v350 = vpop.f32.mrf.mxu0
    %v351 = vadd.f32 %v127, %v350
    %v352 = vpop.f32.mrf.mxu0
    %v353 = vadd.f32 %v127, %v352
    %354 = vmatprep.mubr.bf16.mxu0 0
    %355 = vmatmul.mubr.bf16.gmra.mxu0 %v230
    %v356 = vpop.f32.mrf.mxu0
    %v357 = vadd.f32 %v132, %v356
    %v358 = vpop.f32.mrf.mxu0
    %v359 = vadd.f32 %v132, %v358
    %v360 = vpop.f32.mrf.mxu0
    %v361 = vadd.f32 %v137, %v360
    %v362 = vpop.f32.mrf.mxu0
    %v363 = vadd.f32 %v137, %v362
    %364 = vmatprep.mubr.bf16.mxu0 0
    %365 = vmatmul.mubr.bf16.gmra.mxu0 %v233
    %v366 = vpop.f32.mrf.mxu0
    %v367 = vadd.f32 %v142, %v366
    %v368 = vpop.f32.mrf.mxu0
    %v369 = vadd.f32 %v142, %v368
    %v370 = vpop.f32.mrf.mxu0
    %v371 = vadd.f32 %v147, %v370
    %v372 = vpop.f32.mrf.mxu0
    %v373 = vadd.f32 %v147, %v372
    %374 = vmatprep.mubr.bf16.mxu0 0
    %375 = vmatmul.mubr.bf16.gmra.mxu0 %v236
    %v376 = vpop.f32.mrf.mxu0
    %v377 = vadd.f32 %v152, %v376
    %v378 = vpop.f32.mrf.mxu0
    %v379 = vadd.f32 %v152, %v378
    %v380 = vpop.f32.mrf.mxu0
    %v381 = vadd.f32 %v157, %v380
    %v382 = vpop.f32.mrf.mxu0
    %v383 = vadd.f32 %v157, %v382
    %384 = vmatprep.mubr.bf16.mxu0 0
    %385 = vmatmul.mubr.bf16.gmra.mxu0 %v239
    %v386 = vpop.f32.mrf.mxu0
    %v387 = vadd.f32 %v162, %v386
    %v388 = vpop.f32.mrf.mxu0
    %v389 = vadd.f32 %v162, %v388
    %v390 = vpop.f32.mrf.mxu0
    %v391 = vadd.f32 %v167, %v390
    %v392 = vpop.f32.mrf.mxu0
    %v393 = vadd.f32 %v167, %v392
    %394 = vmatprep.mubr.bf16.mxu0 0
    %395 = vmatmul.mubr.bf16.gmra.mxu0 %v242
    %v396 = vpop.f32.mrf.mxu0
    %v397 = vadd.f32 %v172, %v396
    %v398 = vpop.f32.mrf.mxu0
    %v399 = vadd.f32 %v172, %v398
    %v400 = vpop.f32.mrf.mxu0
    %v401 = vadd.f32 %v177, %v400
    %v402 = vpop.f32.mrf.mxu0
    %v403 = vadd.f32 %v177, %v402
    %404 = vdwg.mxu0
    %v405 = vmax.f32 %v327, 0.0
    %v406 = vmax.f32 %v329, 0.0
    %v407 = vmax.f32 %v331, 0.0
    %v408 = vmax.f32 %v333, 0.0
    %v409 = vmax.f32 %v337, 0.0
    %v410 = vmax.f32 %v339, 0.0
    %v411 = vmax.f32 %v341, 0.0
    %v412 = vmax.f32 %v343, 0.0
    %v413 = vmax.f32 %v347, 0.0
    %v414 = vmax.f32 %v349, 0.0
    %v415 = vmax.f32 %v351, 0.0
    %v416 = vmax.f32 %v353, 0.0
    %v417 = vmax.f32 %v357, 0.0
    %v418 = vmax.f32 %v359, 0.0
    %v419 = vmax.f32 %v361, 0.0
    %v420 = vmax.f32 %v363, 0.0
    %v421 = vmax.f32 %v367, 0.0
    %v422 = vmax.f32 %v369, 0.0
    %v423 = vmax.f32 %v371, 0.0
    %v424 = vmax.f32 %v373, 0.0
    %v425 = vmax.f32 %v377, 0.0
    %v426 = vmax.f32 %v379, 0.0
    %v427 = vmax.f32 %v381, 0.0
    %v428 = vmax.f32 %v383, 0.0
    %v429 = vmax.f32 %v387, 0.0
    %v430 = vmax.f32 %v389, 0.0
    %v431 = vmax.f32 %v391, 0.0
    %v432 = vmax.f32 %v393, 0.0
    %v433 = vmax.f32 %v397, 0.0
    %v434 = vmax.f32 %v399, 0.0
    %v435 = vmax.f32 %v401, 0.0
    %v436 = vmax.f32 %v403, 0.0
    %v437 = vpack.c.bf16 %v407, %v405
    %v438 = vpack.c.bf16 %v408, %v406
    %v439 = vpack.c.bf16 %v411, %v409
    %v440 = vpack.c.bf16 %v412, %v410
    %v441 = vpack.c.bf16 %v415, %v413
    %v442 = vpack.c.bf16 %v416, %v414
    %v443 = vpack.c.bf16 %v419, %v417
    %v444 = vpack.c.bf16 %v420, %v418
    %v445 = vpack.c.bf16 %v423, %v421
    %v446 = vpack.c.bf16 %v424, %v422
    %v447 = vpack.c.bf16 %v427, %v425
    %v448 = vpack.c.bf16 %v428, %v426
    %v449 = vpack.c.bf16 %v431, %v429
    %v450 = vpack.c.bf16 %v432, %v430
    %v451 = vpack.c.bf16 %v435, %v433
    %v452 = vpack.c.bf16 %v436, %v434
    %v453 = vld [vmem:[%s2] sm:$0xf]
    %v454 = vld [vmem:[%s2 + $0x4] sm:$0xf]
    %v455 = vld [vmem:[%s3 + $0x80] sm:$0xff]
    %v456 = vld [vmem:[%s3 + $0x88] sm:$0xff]
    %458 = vset.pattern.permute.xlu0 0
    %459 = vperm.xlu0 %458, %v455
    %v460 = vpop.permute.xlu0 %459
    %463 = vset.pattern.permute.xlu0 0
    %464 = vperm.xlu0 %463, %v456
    %v465 = vpop.permute.xlu0 %464
    %v469 = vunpack.c.l.b16 %v453
    %v470 = vunpack.c.l.b16 %v454
    %v471 = vpack.c.b16 %v470, %v469
    %473 = vmatprep.subr.bf16.mxu0 %v452
    %474 = vmatpush1.bf16.msra.mxu0 %v451
    %475 = vmatprep.subr.bf16.mxu0 %v450
    %476 = vmatpush1.bf16.msra.mxu0 %v449
    %477 = vmatprep.subr.bf16.mxu0 %v448
    %478 = vmatpush1.bf16.msra.mxu0 %v447
    %479 = vmatprep.subr.bf16.mxu0 %v446
    %480 = vmatpush1.bf16.msra.mxu0 %v445
    %481 = vmatprep.subr.bf16.mxu0 %v444
    %482 = vmatpush1.bf16.msra.mxu0 %v443
    %483 = vmatprep.subr.bf16.mxu0 %v442
    %484 = vmatpush1.bf16.msra.mxu0 %v441
    %485 = vmatprep.subr.bf16.mxu0 %v440
    %486 = vmatpush1.bf16.msra.mxu0 %v439
    %487 = vmatprep.subr.bf16.mxu0 %v438
    %488 = vmatpush1.bf16.msra.mxu0 %v437
    %489 = vmatprep.subr.bf16.mxu0 0
    %490 = vmatpush2.bf16.msra.mxu0 0
    %491 = vmatprep.subr.bf16.mxu0 0
    %492 = vmatpush2.bf16.msra.mxu0 0
    %493 = vmatprep.subr.bf16.mxu0 0
    %494 = vmatpush2.bf16.msra.mxu0 0
    %495 = vmatprep.subr.bf16.mxu0 0
    %496 = vmatpush2.bf16.msra.mxu0 0
    %497 = vmatprep.subr.bf16.mxu0 0
    %498 = vmatpush2.bf16.msra.mxu0 0
    %499 = vmatprep.subr.bf16.mxu0 0
    %500 = vmatpush2.bf16.msra.mxu0 0
    %501 = vmatprep.subr.bf16.mxu0 0
    %502 = vmatpush2.bf16.msra.mxu0 0
    %503 = vmatprep.subr.bf16.mxu0 0
    %504 = vmatpush2.bf16.msra.mxu0 0
    %505 = vmatprep.mubr.bf16.mxu0 0
    %506 = vmatmul.mubr.bf16.gmra.mxu0 %v471
    %v507 = vpop.f32.mrf.mxu0
    %v508 = vadd.f32 %v460, %v507
    %v509 = vpop.f32.mrf.mxu0
    %v510 = vadd.f32 %v460, %v509
    %v511 = vpop.f32.mrf.mxu0
    %v512 = vadd.f32 %v465, %v511
    %v513 = vpop.f32.mrf.mxu0
    %v514 = vadd.f32 %v465, %v513
    %515 = vdwg.mxu0
    %v516 = vmax.f32 %v508, 0.0
    %v517 = vmax.f32 %v510, 0.0
    %v518 = vmax.f32 %v512, 0.0
    %v519 = vmax.f32 %v514, 0.0
    %v520 = vpack.c.bf16 %v518, %v516
    %v521 = vpack.c.bf16 %v519, %v517
    %v522 = vld [vmem:[%s2 + $0x8] sm:$0xf]
    %v523 = vld [vmem:[%s2 + $0xc] sm:$0xf]
    %v524 = vld [vmem:[%s3 + $0x90] sm:$0xff]
    %v525 = vld [vmem:[%s3 + $0x98] sm:$0xff]
    %527 = vset.pattern.permute.xlu0 0
    %528 = vperm.xlu0 %527, %v524
    %v529 = vpop.permute.xlu0 %528
    %532 = vset.pattern.permute.xlu0 0
    %533 = vperm.xlu0 %532, %v525
    %v534 = vpop.permute.xlu0 %533
    %v538 = vunpack.c.l.b16 %v522
    %v539 = vunpack.c.l.b16 %v523
    %v540 = vpack.c.b16 %v539, %v538
    %vm541 = vcmask 130048
    %v543 = vsel %vm541, %v540, 0
    %545 = vmatprep.subr.bf16.mxu0 0
    %546 = vmatpush1.bf16.msra.mxu0 0
    %547 = vmatprep.subr.bf16.mxu0 0
    %548 = vmatpush1.bf16.msra.mxu0 0
    %549 = vmatprep.subr.bf16.mxu0 0
    %550 = vmatpush1.bf16.msra.mxu0 0
    %551 = vmatprep.subr.bf16.mxu0 0
    %552 = vmatpush1.bf16.msra.mxu0 0
    %553 = vmatprep.subr.bf16.mxu0 0
    %554 = vmatpush1.bf16.msra.mxu0 0
    %555 = vmatprep.subr.bf16.mxu0 0
    %556 = vmatpush1.bf16.msra.mxu0 0
    %557 = vmatprep.subr.bf16.mxu0 0
    %558 = vmatpush1.bf16.msra.mxu0 0
    %559 = vmatprep.subr.bf16.mxu0 %v521
    %560 = vmatpush1.bf16.msra.mxu0 %v520
    %561 = vmatprep.subr.bf16.mxu0 0
    %562 = vmatpush2.bf16.msra.mxu0 0
    %563 = vmatprep.subr.bf16.mxu0 0
    %564 = vmatpush2.bf16.msra.mxu0 0
    %565 = vmatprep.subr.bf16.mxu0 0
    %566 = vmatpush2.bf16.msra.mxu0 0
    %567 = vmatprep.subr.bf16.mxu0 0
    %568 = vmatpush2.bf16.msra.mxu0 0
    %569 = vmatprep.subr.bf16.mxu0 0
    %570 = vmatpush2.bf16.msra.mxu0 0
    %571 = vmatprep.subr.bf16.mxu0 0
    %572 = vmatpush2.bf16.msra.mxu0 0
    %573 = vmatprep.subr.bf16.mxu0 0
    %574 = vmatpush2.bf16.msra.mxu0 0
    %575 = vmatprep.subr.bf16.mxu0 0
    %576 = vmatpush2.bf16.msra.mxu0 0
    %577 = vmatprep.mubr.bf16.mxu0 0
    %578 = vmatmul.mubr.bf16.gmra.mxu0 %v543
    %v579 = vpop.f32.mrf.mxu0
    %v580 = vadd.f32 %v529, %v579
    %v581 = vpop.f32.mrf.mxu0
    %v582 = vadd.f32 %v529, %v581
    %v583 = vpop.f32.mrf.mxu0
    %v584 = vadd.f32 %v534, %v583
    %v585 = vpop.f32.mrf.mxu0
    %v586 = vadd.f32 %v534, %v585
    %587 = vdwg.mxu0
    %v588 = vmax.f32 %v580, 0.0
    %v589 = vmax.f32 %v582, 0.0
    %v590 = vmax.f32 %v584, 0.0
    %v591 = vmax.f32 %v586, 0.0
    %v592 = vpack.c.bf16 %v590, %v588
    %v593 = vpack.c.bf16 %v591, %v589
    %v594 = vld [vmem:[%s2 + $0x10] sm:$0xf]
    %v595 = vld [vmem:[%s3 + $0xa0] sm:$0xff]
    %597 = vset.pattern.permute.xlu0 0
    %598 = vperm.xlu0 %597, %v595
    %v599 = vpop.permute.xlu0 %598
    %v602 = vsel %vm541, %v594, 0
    %604 = vmatprep.subr.bf16.mxu0 0
    %605 = vmatpush1.bf16.msra.mxu0 0
    %606 = vmatprep.subr.bf16.mxu0 0
    %607 = vmatpush1.bf16.msra.mxu0 0
    %608 = vmatprep.subr.bf16.mxu0 0
    %609 = vmatpush1.bf16.msra.mxu0 0
    %610 = vmatprep.subr.bf16.mxu0 0
    %611 = vmatpush1.bf16.msra.mxu0 0
    %612 = vmatprep.subr.bf16.mxu0 0
    %613 = vmatpush1.bf16.msra.mxu0 0
    %614 = vmatprep.subr.bf16.mxu0 0
    %615 = vmatpush1.bf16.msra.mxu0 0
    %616 = vmatprep.subr.bf16.mxu0 0
    %617 = vmatpush1.bf16.msra.mxu0 0
    %618 = vmatprep.subr.bf16.mxu0 %v593
    %619 = vmatpush1.bf16.msra.mxu0 %v592
    %620 = vmatprep.subr.bf16.mxu0 0
    %621 = vmatpush2.bf16.msra.mxu0 0
    %622 = vmatprep.subr.bf16.mxu0 0
    %623 = vmatpush2.bf16.msra.mxu0 0
    %624 = vmatprep.subr.bf16.mxu0 0
    %625 = vmatpush2.bf16.msra.mxu0 0
    %626 = vmatprep.subr.bf16.mxu0 0
    %627 = vmatpush2.bf16.msra.mxu0 0
    %628 = vmatprep.subr.bf16.mxu0 0
    %629 = vmatpush2.bf16.msra.mxu0 0
    %630 = vmatprep.subr.bf16.mxu0 0
    %631 = vmatpush2.bf16.msra.mxu0 0
    %632 = vmatprep.subr.bf16.mxu0 0
    %633 = vmatpush2.bf16.msra.mxu0 0
    %634 = vmatprep.subr.bf16.mxu0 0
    %635 = vmatpush2.bf16.msra.mxu0 0
    %636 = vmatprep.mubr.bf16.mxu0 0
    %637 = vmatmul.mubr.bf16.gmra.mxu0 %v602
    %v638 = vpop.f32.mrf.mxu0
    %v639 = vadd.f32 %v599, %v638
    %v640 = vpop.f32.mrf.mxu0
    %v641 = vadd.f32 %v599, %v640
    %v642 = vpop.f32.mrf.mxu0
    %v643 = vpop.f32.mrf.mxu0
    %644 = vdwg.mxu0
    %v645 = vmax.f32 %v639, 0.0
    %v646 = vmax.f32 %v641, 0.0
    %v647 = vpack.c.bf16 %v645, %v645
    %v648 = vpack.c.bf16 %v646, %v646
    %v649 = vld [vmem:[%s2 + $0x18] sm:$0xf]
    %v650 = vld [vmem:[%s3 + $0xa8] sm:$0xff]
    %652 = vset.pattern.permute.xlu0 0
    %653 = vperm.xlu0 %652, %v650
    %v654 = vpop.permute.xlu0 %653
    %vm656 = vcmask 64512
    %v658 = vsel %vm656, %v649, 0
    %vm660 = vcmask 1043456
    %v662 = vsel %vm660, %v647, 0
    %v665 = vsel %vm660, %v648, 0
    %667 = vmatprep.subr.bf16.mxu0 0
    %668 = vmatpush1.bf16.msra.mxu0 0
    %669 = vmatprep.subr.bf16.mxu0 0
    %670 = vmatpush1.bf16.msra.mxu0 0
    %671 = vmatprep.subr.bf16.mxu0 0
    %672 = vmatpush1.bf16.msra.mxu0 0
    %673 = vmatprep.subr.bf16.mxu0 0
    %674 = vmatpush1.bf16.msra.mxu0 0
    %675 = vmatprep.subr.bf16.mxu0 0
    %676 = vmatpush1.bf16.msra.mxu0 0
    %677 = vmatprep.subr.bf16.mxu0 0
    %678 = vmatpush1.bf16.msra.mxu0 0
    %679 = vmatprep.subr.bf16.mxu0 0
    %680 = vmatpush1.bf16.msra.mxu0 0
    %681 = vmatprep.subr.bf16.mxu0 %v665
    %682 = vmatpush1.bf16.msra.mxu0 %v662
    %683 = vmatprep.subr.bf16.mxu0 0
    %684 = vmatpush2.bf16.msra.mxu0 0
    %685 = vmatprep.subr.bf16.mxu0 0
    %686 = vmatpush2.bf16.msra.mxu0 0
    %687 = vmatprep.subr.bf16.mxu0 0
    %688 = vmatpush2.bf16.msra.mxu0 0
    %689 = vmatprep.subr.bf16.mxu0 0
    %690 = vmatpush2.bf16.msra.mxu0 0
    %691 = vmatprep.subr.bf16.mxu0 0
    %692 = vmatpush2.bf16.msra.mxu0 0
    %693 = vmatprep.subr.bf16.mxu0 0
    %694 = vmatpush2.bf16.msra.mxu0 0
    %695 = vmatprep.subr.bf16.mxu0 0
    %696 = vmatpush2.bf16.msra.mxu0 0
    %697 = vmatprep.subr.bf16.mxu0 0
    %698 = vmatpush2.bf16.msra.mxu0 0
    %699 = vmatprep.mubr.bf16.mxu0 0
    %700 = vmatmul.mubr.bf16.gmra.mxu0 %v658
    %v701 = vpop.f32.mrf.mxu0
    %v702 = vadd.f32 %v654, %v701
    %v703 = vpop.f32.mrf.mxu0
    %v704 = vadd.f32 %v654, %v703
    %v705 = vpop.f32.mrf.mxu0
    %v706 = vpop.f32.mrf.mxu0
    %707 = vdwg.mxu0
    %v708 = vmax.f32 %v702, 0.0
    %v709 = vmax.f32 %v704, 0.0
    %v710 = vpack.c.bf16 %v708, %v708
    %v711 = vpack.c.bf16 %v709, %v709
    %v712 = vld [vmem:[%s2 + $0x20] sm:$0xf]
    %v713 = vld [vmem:[%s3 + $0xb0] sm:$0xff]
    %715 = vset.pattern.permute.xlu0 0
    %716 = vperm.xlu0 %715, %v713
    %v717 = vpop.permute.xlu0 %716
    %v720 = vsel %vm656, %v712, 0
    %v723 = vsel %vm660, %v710, 0
    %v726 = vsel %vm660, %v711, 0
    %728 = vmatprep.subr.bf16.mxu0 0
    %729 = vmatpush1.bf16.msra.mxu0 0
    %730 = vmatprep.subr.bf16.mxu0 0
    %731 = vmatpush1.bf16.msra.mxu0 0
    %732 = vmatprep.subr.bf16.mxu0 0
    %733 = vmatpush1.bf16.msra.mxu0 0
    %734 = vmatprep.subr.bf16.mxu0 0
    %735 = vmatpush1.bf16.msra.mxu0 0
    %736 = vmatprep.subr.bf16.mxu0 0
    %737 = vmatpush1.bf16.msra.mxu0 0
    %738 = vmatprep.subr.bf16.mxu0 0
    %739 = vmatpush1.bf16.msra.mxu0 0
    %740 = vmatprep.subr.bf16.mxu0 0
    %741 = vmatpush1.bf16.msra.mxu0 0
    %742 = vmatprep.subr.bf16.mxu0 %v726
    %743 = vmatpush1.bf16.msra.mxu0 %v723
    %744 = vmatprep.subr.bf16.mxu0 0
    %745 = vmatpush2.bf16.msra.mxu0 0
    %746 = vmatprep.subr.bf16.mxu0 0
    %747 = vmatpush2.bf16.msra.mxu0 0
    %748 = vmatprep.subr.bf16.mxu0 0
    %749 = vmatpush2.bf16.msra.mxu0 0
    %750 = vmatprep.subr.bf16.mxu0 0
    %751 = vmatpush2.bf16.msra.mxu0 0
    %752 = vmatprep.subr.bf16.mxu0 0
    %753 = vmatpush2.bf16.msra.mxu0 0
    %754 = vmatprep.subr.bf16.mxu0 0
    %755 = vmatpush2.bf16.msra.mxu0 0
    %756 = vmatprep.subr.bf16.mxu0 0
    %757 = vmatpush2.bf16.msra.mxu0 0
    %758 = vmatprep.subr.bf16.mxu0 0
    %759 = vmatpush2.bf16.msra.mxu0 0
    %760 = vmatprep.mubr.bf16.mxu0 0
    %761 = vmatmul.mubr.bf16.gmra.mxu0 %v720
    %v762 = vpop.f32.mrf.mxu0
    %v763 = vadd.f32 %v717, %v762
    %v764 = vpop.f32.mrf.mxu0
    %v765 = vadd.f32 %v717, %v764
    %v766 = vpop.f32.mrf.mxu0
    %v767 = vpop.f32.mrf.mxu0
    %768 = vdwg.mxu0
    %v769 = vmax.f32 %v763, 0.0
    %v770 = vmax.f32 %v765, 0.0
    %v771 = vpack.c.bf16 %v769, %v769
    %v772 = vpack.c.bf16 %v770, %v770
    %v773 = vld [vmem:[%s2 + $0x28] sm:$0x1]
    %v774 = vld [vmem:[%s3 + $0xb8] sm:$0x1]
    %776 = vset.pattern.permute.xlu0 0
    %777 = vperm.xlu0 %776, %v774
    %v778 = vpop.permute.xlu0 %777
    %v781 = vsel %vm656, %v773, 0
    %v784 = vsel %vm660, %v771, 0
    %v787 = vsel %vm660, %v772, 0
    %789 = vmatprep.subr.bf16.mxu0 0
    %790 = vmatpush1.bf16.msra.mxu0 0
    %791 = vmatprep.subr.bf16.mxu0 0
    %792 = vmatpush1.bf16.msra.mxu0 0
    %793 = vmatprep.subr.bf16.mxu0 0
    %794 = vmatpush1.bf16.msra.mxu0 0
    %795 = vmatprep.subr.bf16.mxu0 0
    %796 = vmatpush1.bf16.msra.mxu0 0
    %797 = vmatprep.subr.bf16.mxu0 0
    %798 = vmatpush1.bf16.msra.mxu0 0
    %799 = vmatprep.subr.bf16.mxu0 0
    %800 = vmatpush1.bf16.msra.mxu0 0
    %801 = vmatprep.subr.bf16.mxu0 0
    %802 = vmatpush1.bf16.msra.mxu0 0
    %803 = vmatprep.subr.bf16.mxu0 %v787
    %804 = vmatpush1.bf16.msra.mxu0 %v784
    %805 = vmatprep.subr.bf16.mxu0 0
    %806 = vmatpush2.bf16.msra.mxu0 0
    %807 = vmatprep.subr.bf16.mxu0 0
    %808 = vmatpush2.bf16.msra.mxu0 0
    %809 = vmatprep.subr.bf16.mxu0 0
    %810 = vmatpush2.bf16.msra.mxu0 0
    %811 = vmatprep.subr.bf16.mxu0 0
    %812 = vmatpush2.bf16.msra.mxu0 0
    %813 = vmatprep.subr.bf16.mxu0 0
    %814 = vmatpush2.bf16.msra.mxu0 0
    %815 = vmatprep.subr.bf16.mxu0 0
    %816 = vmatpush2.bf16.msra.mxu0 0
    %817 = vmatprep.subr.bf16.mxu0 0
    %818 = vmatpush2.bf16.msra.mxu0 0
    %819 = vmatprep.subr.bf16.mxu0 0
    %820 = vmatpush2.bf16.msra.mxu0 0
    %821 = vmatprep.mubr.bf16.mxu0 0
    %822 = vmatmul.mubr.bf16.gmra.mxu0 %v781
    %v823 = vpop.f32.mrf.mxu0
    %v824 = vadd.f32 %v778, %v823
    %v825 = vpop.f32.mrf.mxu0
    %v826 = vadd.f32 %v778, %v825
    %v827 = vpop.f32.mrf.mxu0
    %v828 = vpop.f32.mrf.mxu0
    %829 = vdwg.mxu0
    %v830 = vsub.f32 0.0, %v824
    %v831 = vsub.f32 0.0, %v826
    %v832 = vmul.f32 %v830, 1.442695
    %v833 = vpow.pop %v832
    %v834 = vmul.f32 %v831, 1.442695
    %v835 = vpow.pop %v834
    %v836 = vadd.f32 %v833, 1.0
    %v837 = vadd.f32 %v835, 1.0
    %v838 = vrcp.pop %v836
    %v839 = vrcp.pop %v837
    %v842 = vcombine.low %v838, %v839
    %v844 = vunpack.c.l.s4 1966171168
    %v845 = vunpack.c.0.s8 %v844
    %v846 = vlaneseq
    %v847 = vshrl.u32 %v846, 7
    %v848 = vsub.s32 %v845, %v847
    %v849 = vrot.slane %v842, %v848
    %v851 = vunpack.c.l.s4 1966171168
    %v852 = vunpack.c.0.s8 %v851
    %v853 = vlaneseq
    %v854 = vshrl.u32 %v853, 7
    %v855 = vsub.s32 %v852, %v854
    %v856 = vrot.slane %v849, %v855
    %v858 = vlaneseq
    %vm859 = vcmp.ge.s32.totalorder %v858, 0
    %vm860 = vcmp.lt.s32.totalorder %v858, 256
    %vm861 = vmand %vm859, %vm860
    %862 = vst.msk [vmem:[#allocation2] sm:$0x3] %vm861, %v856
    // Predicated region
    $region18: #{tpu_custom_call.1} parent=1 // pred_check
      _
    $region19: #{tpu_custom_call.1} parent=1 // pred_check_branch
      %864 = sbr.rel (0) target = $region21
    $region20: #{tpu_custom_call.1} parent=1 // pred_region
      %s866 = ssub.s32 32, 16
      %867 = vsyncadd [#allocation3], %s866
      %s869 = sshll.u32 [#allocation2], 4
      %s870 = int_to_ptr.vmem [resolvable:$true] %s869
      %872 = dma.vmem_to_hbm [thread:$0]  %s870, 16, %s4, [#allocation3]
    $region21: #{tpu_custom_call.1} parent=1 // pred_fallthru
      _
    // Predicated region
    $region22: #{tpu_custom_call.1} parent=1 // pred_check
      _
    $region23: #{tpu_custom_call.1} parent=1 // pred_check_branch
      %874 = sbr.rel (0) target = $region25
    $region24: #{tpu_custom_call.1} parent=1 // pred_region
      %875 = dma.done [#allocation3], 32
    $region25: #{tpu_custom_call.1} parent=1 // pred_fallthru
      _
    %876 = vsyncpa [#allocation3], 1

</llo_original>
